<compile_context>
chip_gen: v6e
topology: v6e:2x2x1
jax: 0.10.0
libtpu: 0.0.40
codegen_flags: <defaults>
</compile_context>

<pallas_src>
import jax
import jax.numpy as jnp
from jax.experimental import pallas as pl
from jax.experimental.pallas import tpu as pltpu

IN_FEATURES = 400     # 50 * 8 flattened phase image (x's K dim, NOT padded)
HIDDEN = 400          # logical hidden size
HIDDEN_PAD = 512      # lane-dense padded hidden width (4 full vregs per row)
OUT_FEATURES = 50
OUT_PAD = 128         # matmul-2 N padded to full MXU columns; kernel stores [:, :50]


# ----------------------------------------------------------------------------
# Kernel
# ----------------------------------------------------------------------------
def _mlp_kernel(x_ref, w1_ref, b1_ref, w2_ref, b2_ref, o_ref):
    # x_ref : (TB, 400)   f32 or bf16
    # w1_ref: (400, 512)  bf16  (in, out) == torch weight1.T, zero cols 400..511
    # b1_ref: (1, 512)    f32   zero-padded
    # w2_ref: (512, 128)  bf16  (in, out), zero rows 400..511 and cols 50..127
    # b2_ref: (1, 128)    f32   zero-padded
    # o_ref : (TB, 50)    f32
    x = x_ref[...].astype(jnp.bfloat16)                    # no-op when x is already bf16
    h = jnp.dot(x, w1_ref[...], preferred_element_type=jnp.float32)       # (TB, 512)
    h = jnp.maximum(h + b1_ref[...], 0.0)                  # lane-dense f32 VPU ops
    acc = jnp.dot(h.astype(jnp.bfloat16), w2_ref[...],
                  preferred_element_type=jnp.float32)      # (TB, 128)
    # Store only the 50 real logits — no post-kernel slice pass over HBM.
    o_ref[...] = (acc + b2_ref[...])[:, :OUT_FEATURES]


# ----------------------------------------------------------------------------
# One-time parameter preparation (torch layout -> kernel layout)
# ----------------------------------------------------------------------------
def prepare_params(w1, b1, w2, b2, weight_dtype=jnp.bfloat16):
    """Convert torch-layout params once:
       w1: (400, 400) (out, in), b1: (400,), w2: (50, 400) (out, in), b2: (50,)
    Returns kernel-ready (w1_io_pad, b1_pad, w2_io_pad, b2_pad)."""
    w1_io = jnp.zeros((IN_FEATURES, HIDDEN_PAD), weight_dtype)
    w1_io = w1_io.at[:, :HIDDEN].set(
        jnp.asarray(w1, jnp.float32).T.astype(weight_dtype))              # (400, 512)
    b1_r = jnp.zeros((1, HIDDEN_PAD), jnp.float32)
    b1_r = b1_r.at[:, :HIDDEN].set(jnp.asarray(b1, jnp.float32))          # (1, 512)

    w2_io = jnp.zeros((HIDDEN_PAD, OUT_PAD), weight_dtype)
    w2_io = w2_io.at[:HIDDEN, :OUT_FEATURES].set(
        jnp.asarray(w2, jnp.float32).T.astype(weight_dtype))              # (512, 128)
    b2_r = jnp.zeros((1, OUT_PAD), jnp.float32)
    b2_r = b2_r.at[:, :OUT_FEATURES].set(jnp.asarray(b2, jnp.float32))    # (1, 128)
    return w1_io, b1_r, w2_io, b2_r


# ----------------------------------------------------------------------------
# Forward wrapper
# ----------------------------------------------------------------------------
def _default_batch_tile(B):
    # >=2 grid steps when possible (pipelines the x DMA, lets v7x shard the batch
    # axis over both TensorCores), multiple of 8 sublanes, capped for VMEM safety.
    return min(1024, max(128, 8 * pl.cdiv(pl.cdiv(B, 2), 8)))


def fast8phase_forward(x, params, *, batch_tile=None):
    """x: (B, 50, 8) float32 or bfloat16. params: output of prepare_params.
    Returns (B, 50) float32 logits."""
    w1_io, b1_r, w2_io, b2_r = params
    B = x.shape[0]
    x_flat = x.reshape(B, IN_FEATURES)                     # nn.Flatten(), free reshape

    if batch_tile is None and B <= 128:
        # Gridless: whole problem sits in VMEM; no pipeline bookkeeping.
        return pl.pallas_call(
            _mlp_kernel,
            out_shape=jax.ShapeDtypeStruct((B, OUT_FEATURES), jnp.float32),
            in_specs=[pl.BlockSpec(memory_space=pltpu.MemorySpace.VMEM)] * 5,
            out_specs=pl.BlockSpec(memory_space=pltpu.MemorySpace.VMEM),
        )(x_flat, w1_io, b1_r, w2_io, b2_r)

    tb = batch_tile if batch_tile is not None else _default_batch_tile(B)
    tb = 8 * pl.cdiv(min(tb, 2048), 8)                     # multiple of 8, v7x-safe cap
    grid = (pl.cdiv(B, tb),)                               # partial last block is masked
    resident = pl.Buffered(1)                              # weights never refetched
    return pl.pallas_call(
        _mlp_kernel,
        out_shape=jax.ShapeDtypeStruct((B, OUT_FEATURES), jnp.float32),
        grid=grid,
        in_specs=[
            pl.BlockSpec((tb, IN_FEATURES), lambda i: (i, 0)),             # batch-tiled x
            pl.BlockSpec((IN_FEATURES, HIDDEN_PAD), lambda i: (0, 0),
                         pipeline_mode=resident),
            pl.BlockSpec((1, HIDDEN_PAD), lambda i: (0, 0),
                         pipeline_mode=resident),
            pl.BlockSpec((HIDDEN_PAD, OUT_PAD), lambda i: (0, 0),
                         pipeline_mode=resident),
            pl.BlockSpec((1, OUT_PAD), lambda i: (0, 0),
                         pipeline_mode=resident),
        ],
        out_specs=pl.BlockSpec((tb, OUT_FEATURES), lambda i: (i, 0)),
        compiler_params=pltpu.CompilerParams(
            # TODO(synk): use CORE_PARALLEL / explicit core_map gated on chip version
            # for v7x; "parallel" is safe on every generation.
            dimension_semantics=("parallel",),
            vmem_limit_bytes=32 * 1024 * 1024,
        ),
    )(x_flat, w1_io, b1_r, w2_io, b2_r)


# ----------------------------------------------------------------------------
# Reference + init (for the self-test)
# ----------------------------------------------------------------------------
def _init_params(key):
    """torch.nn.Linear default init: U[-1/sqrt(fan_in), 1/sqrt(fan_in)]."""
    k1, k2, k3, k4 = jax.random.split(key, 4)
    bound1 = 1.0 / jnp.sqrt(jnp.float32(IN_FEATURES))
    bound2 = 1.0 / jnp.sqrt(jnp.float32(HIDDEN))
    w1 = jax.random.uniform(k1, (HIDDEN, IN_FEATURES), jnp.float32, -bound1, bound1)
    b1 = jax.random.uniform(k2, (HIDDEN,), jnp.float32, -bound1, bound1)
    w2 = jax.random.uniform(k3, (OUT_FEATURES, HIDDEN), jnp.float32, -bound2, bound2)
    b2 = jax.random.uniform(k4, (OUT_FEATURES,), jnp.float32, -bound2, bound2)
    return w1, b1, w2, b2


def _reference_forward_f32(x, w1, b1, w2, b2):
    x_flat = jnp.asarray(x, jnp.float32).reshape(x.shape[0], IN_FEATURES)
    h = jnp.maximum(x_flat @ w1.T + b1, 0.0)
    return h @ w2.T + b2


def _reference_forward_bf16(x, w1, b1, w2, b2):
    # Mirrors the kernel arithmetic (bf16 matmul operands, f32 accum/elementwise).
    x_flat = x.reshape(x.shape[0], IN_FEATURES).astype(jnp.bfloat16)
    h = jnp.dot(x_flat, w1.T.astype(jnp.bfloat16),
                preferred_element_type=jnp.float32) + b1
    h = jnp.maximum(h, 0.0)
    return jnp.dot(h.astype(jnp.bfloat16), w2.T.astype(jnp.bfloat16),
                   preferred_element_type=jnp.float32) + b2


if __name__ == "__main__":
    key = jax.random.PRNGKey(0)
    k_x1, k_x2, k_x3, k_p = jax.random.split(key, 4)

    w1, b1, w2, b2 = _init_params(k_p)
    params = prepare_params(w1, b1, w2, b2)   # one-time layout/dtype/padding conversion

    # --- small batch: gridless full-VMEM path ---
    batch = 8
    x = jax.random.normal(k_x1, (batch, 50, 8), jnp.float32)   # 50x8 phase images
    logits = jax.block_until_ready(fast8phase_forward(x, params))
    assert logits.shape == (batch, OUT_FEATURES)
    assert jnp.allclose(logits, _reference_forward_bf16(x, w1, b1, w2, b2),
                        atol=2e-3, rtol=1e-3), "mismatch vs bf16 reference (gridless)"
    assert jnp.allclose(logits, _reference_forward_f32(x, w1, b1, w2, b2),
                        atol=5e-2, rtol=5e-2), "mismatch vs f32 reference (gridless)"

    # --- larger batch: batch-tiled (resident weights, pipelined x DMA) ---
    batch2 = 256
    x2 = jax.random.normal(k_x2, (batch2, 50, 8), jnp.float32)
    logits2 = jax.block_until_ready(fast8phase_forward(x2, params))   # default tile -> 128, 2 steps
    assert logits2.shape == (batch2, OUT_FEATURES)
    assert jnp.allclose(logits2, _reference_forward_bf16(x2, w1, b1, w2, b2),
                        atol=2e-3, rtol=1e-3), "mismatch vs bf16 reference (tiled)"

    # --- non-divisible batch: partial last block masked on store ---
    batch3 = 200
    x3 = jax.random.normal(k_x3, (batch3, 50, 8), jnp.float32)
    logits3 = jax.block_until_ready(fast8phase_forward(x3, params, batch_tile=128))
    assert logits3.shape == (batch3, OUT_FEATURES)
    assert jnp.allclose(logits3, _reference_forward_bf16(x3, w1, b1, w2, b2),
                        atol=2e-3, rtol=1e-3), "mismatch vs bf16 reference (partial block)"

    # --- bf16 ingestion (producer emits bf16; no extra cast pass in the wrapper) ---
    logits4 = jax.block_until_ready(fast8phase_forward(x2.astype(jnp.bfloat16), params))
    assert jnp.allclose(logits4, _reference_forward_bf16(x2, w1, b1, w2, b2),
                        atol=2e-3, rtol=1e-3), "mismatch vs bf16 reference (bf16 x)"

    print("KERNEL_OK")
</pallas_src>

<mosaic_0001>
module attributes {stable_mosaic.version = 11 : i64} {
  func.func @_mlp_kernel(%arg0: memref<8x400xf32, #tpu.memory_space<vmem>>, %arg1: memref<400x512xbf16, #tpu.memory_space<vmem>>, %arg2: memref<1x512xf32, #tpu.memory_space<vmem>>, %arg3: memref<512x128xbf16, #tpu.memory_space<vmem>>, %arg4: memref<1x128xf32, #tpu.memory_space<vmem>>, %arg5: memref<8x50xf32, #tpu.memory_space<vmem>>) attributes {dimension_semantics = [], scalar_prefetch = 0 : i64, scratch_operands = 0 : i64, tpu.core_type = #tpu.core_type<tc>} {
    %c0 = arith.constant 0 : index
    %c0_0 = arith.constant 0 : index
    %0 = vector.load %arg0[%c0, %c0_0] : memref<8x400xf32, #tpu.memory_space<vmem>>, vector<8x400xf32>
    %1 = arith.truncf %0 : vector<8x400xf32> to vector<8x400xbf16>
    %c0_1 = arith.constant 0 : index
    %c0_2 = arith.constant 0 : index
    %2 = vector.load %arg1[%c0_1, %c0_2] : memref<400x512xbf16, #tpu.memory_space<vmem>>, vector<400x512xbf16>
    %cst = arith.constant dense<0.000000e+00> : vector<8x512xf32>
    %3 = tpu.matmul %1, %2, %cst {dimension_numbers = #tpu.dot_dimension_numbers<[1], [0], [0], [1], [0, 0, 1, 1], [], []>} : vector<8x400xbf16>, vector<400x512xbf16>, vector<8x512xf32> -> vector<8x512xf32>
    %c0_3 = arith.constant 0 : index
    %c0_4 = arith.constant 0 : index
    %4 = vector.load %arg2[%c0_3, %c0_4] : memref<1x512xf32, #tpu.memory_space<vmem>>, vector<1x512xf32>
    %5 = vector.broadcast %4 : vector<1x512xf32> to vector<8x512xf32>
    %6 = arith.addf %3, %5 : vector<8x512xf32>
    %cst_5 = arith.constant 0.000000e+00 : f32
    %7 = vector.broadcast %cst_5 : f32 to vector<8x512xf32>
    %8 = arith.maximumf %6, %7 : vector<8x512xf32>
    %9 = arith.truncf %8 : vector<8x512xf32> to vector<8x512xbf16>
    %c0_6 = arith.constant 0 : index
    %c0_7 = arith.constant 0 : index
    %10 = vector.load %arg3[%c0_6, %c0_7] : memref<512x128xbf16, #tpu.memory_space<vmem>>, vector<512x128xbf16>
    %cst_8 = arith.constant dense<0.000000e+00> : vector<8x128xf32>
    %11 = tpu.matmul %9, %10, %cst_8 {dimension_numbers = #tpu.dot_dimension_numbers<[1], [0], [0], [1], [0, 0, 1, 1], [], []>} : vector<8x512xbf16>, vector<512x128xbf16>, vector<8x128xf32> -> vector<8x128xf32>
    %c0_9 = arith.constant 0 : index
    %c0_10 = arith.constant 0 : index
    %12 = vector.load %arg4[%c0_9, %c0_10] : memref<1x128xf32, #tpu.memory_space<vmem>>, vector<1x128xf32>
    %13 = vector.broadcast %12 : vector<1x128xf32> to vector<8x128xf32>
    %14 = arith.addf %11, %13 : vector<8x128xf32>
    %15 = vector.extract_strided_slice %14 {offsets = [0, 0], sizes = [8, 50], strides = [1, 1]} : vector<8x128xf32> to vector<8x50xf32>
    %c0_11 = arith.constant 0 : index
    %c0_12 = arith.constant 0 : index
    %16 = vector.load %arg5[%c0_11, %c0_12] : memref<8x50xf32, #tpu.memory_space<vmem>>, vector<8x50xf32>
    tpu.vector_store %arg5[%c0_11, %c0_12], %15 {strides = array<i32>} : memref<8x50xf32, #tpu.memory_space<vmem>>, vector<8x50xf32>,
    return
  }
}

</mosaic_0001>

<llo_original>
// kernel: tpu_custom_call.1
$region0: #{tpu_custom_call.1}
  #allocation0 [shape = 'u32[]', space=smem, size = 0x4, offset = 0x4, fixed_abs, tag = 'smem constant byte address 0x4 - core index']
  #allocation1 [shape = 'u32[144,128]{1,0:T(1,128)}', space=vmem, size = 0x12000, scoped, tag = 'internal scratch']
  %s0 = inlined_call_operand.hbm [shape: f32[8,400], index: 0, kind: input, shape index: {}]
  %s1 = inlined_call_operand.hbm [shape: bf16[400,512], index: 1, kind: input, shape index: {}]
  %s2 = inlined_call_operand.hbm [shape: f32[1,512], index: 2, kind: input, shape index: {}]
  %s3 = inlined_call_operand.hbm [shape: bf16[512,128], index: 3, kind: input, shape index: {}]
  %s4 = inlined_call_operand.vmem [shape: f32[1,128], index: 4, kind: input, shape index: {}]
  %s5 = inlined_call_operand.hbm [shape: f32[8,50], index: 5, kind: output, shape index: {}]
  %s6 = sld [smem:[#allocation0]]
  $region46: #{tpu_custom_call.1} parent=0
    _
  %s8 = ssub.s32 1, %s6
  %s9 = scalar_select 0, %s8, %s6
  $region1: #{tpu_custom_call.1} parent=0
    #allocation2 [shape = 'u8[16384]{0}', space=vmem, size = 0x4000, scoped, tag = 'input window, operand 0, single buffered']
    #allocation3 [shape = 's32[1]{0}', space=sflag, size = 0x4, scoped, tag = 'scoped memory for tpu_custom_call.1']
    #allocation4 [shape = 's32[1]{0}', space=sflag, size = 0x4, scoped, tag = 'scoped memory for tpu_custom_call.1']
    #allocation5 [shape = 'u8[409600]{0}', space=vmem, size = 0x64000, scoped, tag = 'input window, operand 1, single buffered']
    #allocation6 [shape = 's32[1]{0}', space=sflag, size = 0x4, scoped, tag = 'scoped memory for tpu_custom_call.1']
    #allocation7 [shape = 'u8[2048]{0}', space=vmem, size = 0x800, scoped, tag = 'input window, operand 2, single buffered']
    #allocation8 [shape = 'u8[131072]{0}', space=vmem, size = 0x20000, scoped, tag = 'input window, operand 3, single buffered']
    #allocation9 [shape = 's32[1]{0}', space=sflag, size = 0x4, scoped, tag = 'scoped memory for tpu_custom_call.1']
    #allocation10 [shape = 'u8[4096]{0}', space=vmem, size = 0x1000, scoped, tag = 'output window, operand 0, single buffered']
    %10 = vsyncpa [#allocation3], 0
    %11 = vsyncpa [#allocation6], 0
    %12 = vsyncpa [#allocation9], 0
    %13 = vsyncpa [#allocation4], 0
    // Predicated region
    $region2: #{tpu_custom_call.1} parent=1 // pred_check
      _
    $region3: #{tpu_custom_call.1} parent=1 // pred_check_branch
      %15 = sbr.rel (0) target = $region5
    $region4: #{tpu_custom_call.1} parent=1 // pred_region
      %s17 = ssub.s32 512, 512
      %18 = vsyncadd [#allocation3], %s17
      %s20 = sshll.u32 [#allocation2], 4
      %s21 = int_to_ptr.vmem [resolvable:$true] %s20
      %23 = dma.hbm_to_vmem [thread:$0]  %s0, 512, %s21, [#allocation3]
    $region5: #{tpu_custom_call.1} parent=1 // pred_fallthru
      _
    // Predicated region
    $region6: #{tpu_custom_call.1} parent=1 // pred_check
      _
    $region7: #{tpu_custom_call.1} parent=1 // pred_check_branch
      %25 = sbr.rel (0) target = $region9
    $region8: #{tpu_custom_call.1} parent=1 // pred_region
      %s27 = ssub.s32 12800, 12800
      %28 = vsyncadd [#allocation6], %s27
      %s29 = sshll.u32 [#allocation5], 4
      %s30 = int_to_ptr.vmem [resolvable:$true] %s29
      %35 = dma.hbm_to_vmem [thread:$0]  %s1, 12800, %s30, [#allocation6], 256, 256, 16
    $region9: #{tpu_custom_call.1} parent=1 // pred_fallthru
      _
    // Predicated region
    $region10: #{tpu_custom_call.1} parent=1 // pred_check
      _
    $region11: #{tpu_custom_call.1} parent=1 // pred_check_branch
      %37 = sbr.rel (0) target = $region13
    $region12: #{tpu_custom_call.1} parent=1 // pred_region
      %s39 = ssub.s32 64, 64
      %40 = vsyncadd [#allocation6], %s39
      %s42 = sshll.u32 [#allocation7], 4
      %s43 = int_to_ptr.vmem [resolvable:$true] %s42
      %45 = dma.hbm_to_vmem [thread:$0]  %s2, 64, %s43, [#allocation6]
    $region13: #{tpu_custom_call.1} parent=1 // pred_fallthru
      _
    // Predicated region
    $region14: #{tpu_custom_call.1} parent=1 // pred_check
      _
    $region15: #{tpu_custom_call.1} parent=1 // pred_check_branch
      %47 = sbr.rel (0) target = $region17
    $region16: #{tpu_custom_call.1} parent=1 // pred_region
      %s49 = ssub.s32 4096, 4096
      %50 = vsyncadd [#allocation9], %s49
      %s51 = sshll.u32 [#allocation8], 4
      %s52 = int_to_ptr.vmem [resolvable:$true] %s51
      %57 = dma.hbm_to_vmem [thread:$0]  %s3, 4096, %s52, [#allocation9], 64, 64, 4
    $region17: #{tpu_custom_call.1} parent=1 // pred_fallthru
      _
    // Predicated region
    $region18: #{tpu_custom_call.1} parent=1 // pred_check
      _
    $region19: #{tpu_custom_call.1} parent=1 // pred_check_branch
      %59 = sbr.rel (0) target = $region21
    $region20: #{tpu_custom_call.1} parent=1 // pred_region
      _
    $region21: #{tpu_custom_call.1} parent=1 // pred_fallthru
      _
    // Predicated region
    $region22: #{tpu_custom_call.1} parent=1 // pred_check
      _
    $region23: #{tpu_custom_call.1} parent=1 // pred_check_branch
      %61 = sbr.rel (0) target = $region25
    $region24: #{tpu_custom_call.1} parent=1 // pred_region
      %62 = dma.done [#allocation3], 512
    $region25: #{tpu_custom_call.1} parent=1 // pred_fallthru
      _
    // Predicated region
    $region26: #{tpu_custom_call.1} parent=1 // pred_check
      _
    $region27: #{tpu_custom_call.1} parent=1 // pred_check_branch
      %64 = sbr.rel (0) target = $region29
    $region28: #{tpu_custom_call.1} parent=1 // pred_region
      %65 = dma.done [#allocation6], 12800
    $region29: #{tpu_custom_call.1} parent=1 // pred_fallthru
      _
    // Predicated region
    $region30: #{tpu_custom_call.1} parent=1 // pred_check
      _
    $region31: #{tpu_custom_call.1} parent=1 // pred_check_branch
      %67 = sbr.rel (0) target = $region33
    $region32: #{tpu_custom_call.1} parent=1 // pred_region
      %68 = dma.done [#allocation6], 64
    $region33: #{tpu_custom_call.1} parent=1 // pred_fallthru
      _
    // Predicated region
    $region34: #{tpu_custom_call.1} parent=1 // pred_check
      _
    $region35: #{tpu_custom_call.1} parent=1 // pred_check_branch
      %70 = sbr.rel (0) target = $region37
    $region36: #{tpu_custom_call.1} parent=1 // pred_region
      %71 = dma.done [#allocation9], 4096
    $region37: #{tpu_custom_call.1} parent=1 // pred_fallthru
      _
    %v73 = vld [vmem:[#allocation2] sm:$0xff]
    %v74 = vld [vmem:[#allocation2 + $0x8] sm:$0xff]
    %v75 = vld [vmem:[#allocation2 + $0x10] sm:$0xff]
    %v76 = vld [vmem:[#allocation2 + $0x18] sm:$0xff]
    %v77 = vpack.c.bf16 %v73, %v73
    %v78 = vpack.c.bf16 %v74, %v74
    %v79 = vpack.c.bf16 %v75, %v75
    %v80 = vpack.c.bf16 %v76, %v76
    %v81 = vld [vmem:[#allocation5] sm:$0xff]
    %v82 = vld [vmem:[#allocation5 + $0x8] sm:$0xff]
    %v83 = vld [vmem:[#allocation5 + $0x10] sm:$0xff]
    %v84 = vld [vmem:[#allocation5 + $0x18] sm:$0xff]
    %v85 = vld [vmem:[#allocation5 + $0x20] sm:$0xff]
    %v86 = vld [vmem:[#allocation5 + $0x28] sm:$0xff]
    %v87 = vld [vmem:[#allocation5 + $0x30] sm:$0xff]
    %v88 = vld [vmem:[#allocation5 + $0x38] sm:$0xff]
    %v89 = vld [vmem:[#allocation5 + $0x40] sm:$0xff]
    %v90 = vld [vmem:[#allocation5 + $0x48] sm:$0xff]
    %v91 = vld [vmem:[#allocation5 + $0x50] sm:$0xff]
    %v92 = vld [vmem:[#allocation5 + $0x58] sm:$0xff]
    %v93 = vld [vmem:[#allocation5 + $0x60] sm:$0xff]
    %v94 = vld [vmem:[#allocation5 + $0x68] sm:$0xff]
    %v95 = vld [vmem:[#allocation5 + $0x70] sm:$0xff]
    %v96 = vld [vmem:[#allocation5 + $0x78] sm:$0xff]
    %v97 = vld [vmem:[#allocation5 + $0x80] sm:$0xff]
    %v98 = vld [vmem:[#allocation5 + $0x88] sm:$0xff]
    %v99 = vld [vmem:[#allocation5 + $0x90] sm:$0xff]
    %v100 = vld [vmem:[#allocation5 + $0x98] sm:$0xff]
    %v101 = vld [vmem:[#allocation5 + $0xa0] sm:$0xff]
    %v102 = vld [vmem:[#allocation5 + $0xa8] sm:$0xff]
    %v103 = vld [vmem:[#allocation5 + $0xb0] sm:$0xff]
    %v104 = vld [vmem:[#allocation5 + $0xb8] sm:$0xff]
    %v105 = vld [vmem:[#allocation5 + $0xc0] sm:$0xff]
    %v106 = vld [vmem:[#allocation5 + $0xc8] sm:$0xff]
    %v107 = vld [vmem:[#allocation5 + $0xd0] sm:$0xff]
    %v108 = vld [vmem:[#allocation5 + $0xd8] sm:$0xff]
    %v109 = vld [vmem:[#allocation5 + $0xe0] sm:$0xff]
    %v110 = vld [vmem:[#allocation5 + $0xe8] sm:$0xff]
    %v111 = vld [vmem:[#allocation5 + $0xf0] sm:$0xff]
    %v112 = vld [vmem:[#allocation5 + $0xf8] sm:$0xff]
    %v113 = vld [vmem:[#allocation5 + $0x100] sm:$0xff]
    %v114 = vld [vmem:[#allocation5 + $0x108] sm:$0xff]
    %v115 = vld [vmem:[#allocation5 + $0x110] sm:$0xff]
    %v116 = vld [vmem:[#allocation5 + $0x118] sm:$0xff]
    %v117 = vld [vmem:[#allocation5 + $0x120] sm:$0xff]
    %v118 = vld [vmem:[#allocation5 + $0x128] sm:$0xff]
    %v119 = vld [vmem:[#allocation5 + $0x130] sm:$0xff]
    %v120 = vld [vmem:[#allocation5 + $0x138] sm:$0xff]
    %v121 = vld [vmem:[#allocation5 + $0x140] sm:$0xff]
    %v122 = vld [vmem:[#allocation5 + $0x148] sm:$0xff]
    %v123 = vld [vmem:[#allocation5 + $0x150] sm:$0xff]
    %v124 = vld [vmem:[#allocation5 + $0x158] sm:$0xff]
    %v125 = vld [vmem:[#allocation5 + $0x160] sm:$0xff]
    %v126 = vld [vmem:[#allocation5 + $0x168] sm:$0xff]
    %v127 = vld [vmem:[#allocation5 + $0x170] sm:$0xff]
    %v128 = vld [vmem:[#allocation5 + $0x178] sm:$0xff]
    %v129 = vld [vmem:[#allocation5 + $0x180] sm:$0xff]
    %v130 = vld [vmem:[#allocation5 + $0x188] sm:$0xff]
    %v131 = vld [vmem:[#allocation5 + $0x190] sm:$0xff]
    %v132 = vld [vmem:[#allocation5 + $0x198] sm:$0xff]
    %v133 = vld [vmem:[#allocation5 + $0x1a0] sm:$0xff]
    %v134 = vld [vmem:[#allocation5 + $0x1a8] sm:$0xff]
    %v135 = vld [vmem:[#allocation5 + $0x1b0] sm:$0xff]
    %v136 = vld [vmem:[#allocation5 + $0x1b8] sm:$0xff]
    %v137 = vld [vmem:[#allocation5 + $0x1c0] sm:$0xff]
    %v138 = vld [vmem:[#allocation5 + $0x1c8] sm:$0xff]
    %v139 = vld [vmem:[#allocation5 + $0x1d0] sm:$0xff]
    %v140 = vld [vmem:[#allocation5 + $0x1d8] sm:$0xff]
    %v141 = vld [vmem:[#allocation5 + $0x1e0] sm:$0xff]
    %v142 = vld [vmem:[#allocation5 + $0x1e8] sm:$0xff]
    %v143 = vld [vmem:[#allocation5 + $0x1f0] sm:$0xff]
    %v144 = vld [vmem:[#allocation5 + $0x1f8] sm:$0xff]
    %v145 = vld [vmem:[#allocation5 + $0x200] sm:$0xff]
    %v146 = vld [vmem:[#allocation5 + $0x208] sm:$0xff]
    %v147 = vld [vmem:[#allocation5 + $0x210] sm:$0xff]
    %v148 = vld [vmem:[#allocation5 + $0x218] sm:$0xff]
    %v149 = vld [vmem:[#allocation5 + $0x220] sm:$0xff]
    %v150 = vld [vmem:[#allocation5 + $0x228] sm:$0xff]
    %v151 = vld [vmem:[#allocation5 + $0x230] sm:$0xff]
    %v152 = vld [vmem:[#allocation5 + $0x238] sm:$0xff]
    %v153 = vld [vmem:[#allocation5 + $0x240] sm:$0xff]
    %v154 = vld [vmem:[#allocation5 + $0x248] sm:$0xff]
    %v155 = vld [vmem:[#allocation5 + $0x250] sm:$0xff]
    %v156 = vld [vmem:[#allocation5 + $0x258] sm:$0xff]
    %v157 = vld [vmem:[#allocation5 + $0x260] sm:$0xff]
    %v158 = vld [vmem:[#allocation5 + $0x268] sm:$0xff]
    %v159 = vld [vmem:[#allocation5 + $0x270] sm:$0xff]
    %v160 = vld [vmem:[#allocation5 + $0x278] sm:$0xff]
    %v161 = vld [vmem:[#allocation5 + $0x280] sm:$0xff]
    %v162 = vld [vmem:[#allocation5 + $0x288] sm:$0xff]
    %v163 = vld [vmem:[#allocation5 + $0x290] sm:$0xff]
    %v164 = vld [vmem:[#allocation5 + $0x298] sm:$0xff]
    %v165 = vld [vmem:[#allocation5 + $0x2a0] sm:$0xff]
    %v166 = vld [vmem:[#allocation5 + $0x2a8] sm:$0xff]
    %v167 = vld [vmem:[#allocation5 + $0x2b0] sm:$0xff]
    %v168 = vld [vmem:[#allocation5 + $0x2b8] sm:$0xff]
    %v169 = vld [vmem:[#allocation5 + $0x2c0] sm:$0xff]
    %v170 = vld [vmem:[#allocation5 + $0x2c8] sm:$0xff]
    %v171 = vld [vmem:[#allocation5 + $0x2d0] sm:$0xff]
    %v172 = vld [vmem:[#allocation5 + $0x2d8] sm:$0xff]
    %v173 = vld [vmem:[#allocation5 + $0x2e0] sm:$0xff]
    %v174 = vld [vmem:[#allocation5 + $0x2e8] sm:$0xff]
    %v175 = vld [vmem:[#allocation5 + $0x2f0] sm:$0xff]
    %v176 = vld [vmem:[#allocation5 + $0x2f8] sm:$0xff]
    %v177 = vld [vmem:[#allocation5 + $0x300] sm:$0xff]
    %v178 = vld [vmem:[#allocation5 + $0x308] sm:$0xff]
    %v179 = vld [vmem:[#allocation5 + $0x310] sm:$0xff]
    %v180 = vld [vmem:[#allocation5 + $0x318] sm:$0xff]
    %v181 = vld [vmem:[#allocation7] sm:$0xf]
    %v183 = vlaneseq
    %v184 = vshrl.u32 %v183, 7
    %v185 = vsub.s32 0, %v184
    %v186 = vrot.slane %v181, %v185
    %v187 = vlaneseq
    %v188 = vshrl.u32 %v187, 7
    %v189 = vsub.s32 1, %v188
    %v190 = vrot.slane %v181, %v189
    %v191 = vlaneseq
    %v192 = vshrl.u32 %v191, 7
    %v193 = vsub.s32 2, %v192
    %v194 = vrot.slane %v181, %v193
    %v195 = vlaneseq
    %v196 = vshrl.u32 %v195, 7
    %v197 = vsub.s32 3, %v196
    %v198 = vrot.slane %v181, %v197
    %v303 = vunpack.c.l.b16 %v81
    %v304 = vunpack.c.h.b16 %v81
    %v305 = vunpack.c.l.b16 %v82
    %v306 = vunpack.c.h.b16 %v82
    %v307 = vunpack.c.l.b16 %v83
    %v308 = vunpack.c.h.b16 %v83
    %v309 = vunpack.c.l.b16 %v84
    %v310 = vunpack.c.h.b16 %v84
    %v311 = vunpack.c.l.b16 %v85
    %v312 = vunpack.c.h.b16 %v85
    %v313 = vunpack.c.l.b16 %v86
    %v314 = vunpack.c.h.b16 %v86
    %v315 = vunpack.c.l.b16 %v87
    %v316 = vunpack.c.h.b16 %v87
    %v317 = vunpack.c.l.b16 %v88
    %v318 = vunpack.c.h.b16 %v88
    %v319 = vunpack.c.l.b16 %v89
    %v320 = vunpack.c.h.b16 %v89
    %v321 = vunpack.c.l.b16 %v90
    %v322 = vunpack.c.h.b16 %v90
    %v323 = vunpack.c.l.b16 %v91
    %v324 = vunpack.c.h.b16 %v91
    %v325 = vunpack.c.l.b16 %v92
    %v326 = vunpack.c.h.b16 %v92
    %v327 = vunpack.c.l.b16 %v93
    %v328 = vunpack.c.h.b16 %v93
    %v329 = vunpack.c.l.b16 %v94
    %v330 = vunpack.c.h.b16 %v94
    %v331 = vunpack.c.l.b16 %v95
    %v332 = vunpack.c.h.b16 %v95
    %v333 = vunpack.c.l.b16 %v96
    %v334 = vunpack.c.h.b16 %v96
    %v335 = vunpack.c.l.b16 %v97
    %v336 = vunpack.c.h.b16 %v97
    %v337 = vunpack.c.l.b16 %v98
    %v338 = vunpack.c.h.b16 %v98
    %v339 = vunpack.c.l.b16 %v99
    %v340 = vunpack.c.h.b16 %v99
    %v341 = vunpack.c.l.b16 %v100
    %v342 = vunpack.c.h.b16 %v100
    %v343 = vunpack.c.l.b16 %v101
    %v344 = vunpack.c.h.b16 %v101
    %v345 = vunpack.c.l.b16 %v102
    %v346 = vunpack.c.h.b16 %v102
    %v347 = vunpack.c.l.b16 %v103
    %v348 = vunpack.c.h.b16 %v103
    %v349 = vunpack.c.l.b16 %v104
    %v350 = vunpack.c.h.b16 %v104
    %v351 = vunpack.c.l.b16 %v105
    %v352 = vunpack.c.h.b16 %v105
    %v353 = vunpack.c.l.b16 %v106
    %v354 = vunpack.c.h.b16 %v106
    %v355 = vunpack.c.l.b16 %v107
    %v356 = vunpack.c.h.b16 %v107
    %v357 = vunpack.c.l.b16 %v108
    %v358 = vunpack.c.h.b16 %v108
    %v359 = vunpack.c.l.b16 %v109
    %v360 = vunpack.c.h.b16 %v109
    %v361 = vunpack.c.l.b16 %v110
    %v362 = vunpack.c.h.b16 %v110
    %v363 = vunpack.c.l.b16 %v111
    %v364 = vunpack.c.h.b16 %v111
    %v365 = vunpack.c.l.b16 %v112
    %v366 = vunpack.c.h.b16 %v112
    %v367 = vunpack.c.l.b16 %v113
    %v368 = vunpack.c.h.b16 %v113
    %v369 = vunpack.c.l.b16 %v114
    %v370 = vunpack.c.h.b16 %v114
    %v371 = vunpack.c.l.b16 %v115
    %v372 = vunpack.c.h.b16 %v115
    %v373 = vunpack.c.l.b16 %v116
    %v374 = vunpack.c.h.b16 %v116
    %v375 = vunpack.c.l.b16 %v117
    %v376 = vunpack.c.h.b16 %v117
    %v377 = vunpack.c.l.b16 %v118
    %v378 = vunpack.c.h.b16 %v118
    %v379 = vunpack.c.l.b16 %v119
    %v380 = vunpack.c.h.b16 %v119
    %v381 = vunpack.c.l.b16 %v120
    %v382 = vunpack.c.h.b16 %v120
    %v383 = vunpack.c.l.b16 %v121
    %v384 = vunpack.c.h.b16 %v121
    %v385 = vunpack.c.l.b16 %v122
    %v386 = vunpack.c.h.b16 %v122
    %v387 = vunpack.c.l.b16 %v123
    %v388 = vunpack.c.h.b16 %v123
    %v389 = vunpack.c.l.b16 %v124
    %v390 = vunpack.c.h.b16 %v124
    %v391 = vunpack.c.l.b16 %v125
    %v392 = vunpack.c.h.b16 %v125
    %v393 = vunpack.c.l.b16 %v126
    %v394 = vunpack.c.h.b16 %v126
    %v395 = vunpack.c.l.b16 %v127
    %v396 = vunpack.c.h.b16 %v127
    %v397 = vunpack.c.l.b16 %v128
    %v398 = vunpack.c.h.b16 %v128
    %v399 = vunpack.c.l.b16 %v129
    %v400 = vunpack.c.h.b16 %v129
    %v401 = vunpack.c.l.b16 %v130
    %v402 = vunpack.c.h.b16 %v130
    %v403 = vunpack.c.l.b16 %v131
    %v404 = vunpack.c.h.b16 %v131
    %v405 = vunpack.c.l.b16 %v132
    %v406 = vunpack.c.h.b16 %v132
    %v407 = vunpack.c.l.b16 %v133
    %v408 = vunpack.c.h.b16 %v133
    %v409 = vunpack.c.l.b16 %v134
    %v410 = vunpack.c.h.b16 %v134
    %v411 = vunpack.c.l.b16 %v135
    %v412 = vunpack.c.h.b16 %v135
    %v413 = vunpack.c.l.b16 %v136
    %v414 = vunpack.c.h.b16 %v136
    %v415 = vunpack.c.l.b16 %v137
    %v416 = vunpack.c.h.b16 %v137
    %v417 = vunpack.c.l.b16 %v138
    %v418 = vunpack.c.h.b16 %v138
    %v419 = vunpack.c.l.b16 %v139
    %v420 = vunpack.c.h.b16 %v139
    %v421 = vunpack.c.l.b16 %v140
    %v422 = vunpack.c.h.b16 %v140
    %v423 = vunpack.c.l.b16 %v141
    %v424 = vunpack.c.h.b16 %v141
    %v425 = vunpack.c.l.b16 %v142
    %v426 = vunpack.c.h.b16 %v142
    %v427 = vunpack.c.l.b16 %v143
    %v428 = vunpack.c.h.b16 %v143
    %v429 = vunpack.c.l.b16 %v144
    %v430 = vunpack.c.h.b16 %v144
    %v431 = vunpack.c.l.b16 %v145
    %v432 = vunpack.c.h.b16 %v145
    %v433 = vunpack.c.l.b16 %v146
    %v434 = vunpack.c.h.b16 %v146
    %v435 = vunpack.c.l.b16 %v147
    %v436 = vunpack.c.h.b16 %v147
    %v437 = vunpack.c.l.b16 %v148
    %v438 = vunpack.c.h.b16 %v148
    %v439 = vunpack.c.l.b16 %v149
    %v440 = vunpack.c.h.b16 %v149
    %v441 = vunpack.c.l.b16 %v150
    %v442 = vunpack.c.h.b16 %v150
    %v443 = vunpack.c.l.b16 %v151
    %v444 = vunpack.c.h.b16 %v151
    %v445 = vunpack.c.l.b16 %v152
    %v446 = vunpack.c.h.b16 %v152
    %v447 = vunpack.c.l.b16 %v153
    %v448 = vunpack.c.h.b16 %v153
    %v449 = vunpack.c.l.b16 %v154
    %v450 = vunpack.c.h.b16 %v154
    %v451 = vunpack.c.l.b16 %v155
    %v452 = vunpack.c.h.b16 %v155
    %v453 = vunpack.c.l.b16 %v156
    %v454 = vunpack.c.h.b16 %v156
    %v455 = vunpack.c.l.b16 %v157
    %v456 = vunpack.c.h.b16 %v157
    %v457 = vunpack.c.l.b16 %v158
    %v458 = vunpack.c.h.b16 %v158
    %v459 = vunpack.c.l.b16 %v159
    %v460 = vunpack.c.h.b16 %v159
    %v461 = vunpack.c.l.b16 %v160
    %v462 = vunpack.c.h.b16 %v160
    %v463 = vunpack.c.l.b16 %v161
    %v464 = vunpack.c.h.b16 %v161
    %v465 = vunpack.c.l.b16 %v162
    %v466 = vunpack.c.h.b16 %v162
    %v467 = vunpack.c.l.b16 %v163
    %v468 = vunpack.c.h.b16 %v163
    %v469 = vunpack.c.l.b16 %v164
    %v470 = vunpack.c.h.b16 %v164
    %v471 = vunpack.c.l.b16 %v165
    %v472 = vunpack.c.h.b16 %v165
    %v473 = vunpack.c.l.b16 %v166
    %v474 = vunpack.c.h.b16 %v166
    %v475 = vunpack.c.l.b16 %v167
    %v476 = vunpack.c.h.b16 %v167
    %v477 = vunpack.c.l.b16 %v168
    %v478 = vunpack.c.h.b16 %v168
    %v479 = vunpack.c.l.b16 %v169
    %v480 = vunpack.c.h.b16 %v169
    %v481 = vunpack.c.l.b16 %v170
    %v482 = vunpack.c.h.b16 %v170
    %v483 = vunpack.c.l.b16 %v171
    %v484 = vunpack.c.h.b16 %v171
    %v485 = vunpack.c.l.b16 %v172
    %v486 = vunpack.c.h.b16 %v172
    %v487 = vunpack.c.l.b16 %v173
    %v488 = vunpack.c.h.b16 %v173
    %v489 = vunpack.c.l.b16 %v174
    %v490 = vunpack.c.h.b16 %v174
    %v491 = vunpack.c.l.b16 %v175
    %v492 = vunpack.c.h.b16 %v175
    %v493 = vunpack.c.l.b16 %v176
    %v494 = vunpack.c.h.b16 %v176
    %v495 = vunpack.c.l.b16 %v177
    %v496 = vunpack.c.h.b16 %v177
    %v497 = vunpack.c.l.b16 %v178
    %v498 = vunpack.c.h.b16 %v178
    %v499 = vunpack.c.l.b16 %v179
    %v500 = vunpack.c.h.b16 %v179
    %v501 = vunpack.c.l.b16 %v180
    %v502 = vunpack.c.h.b16 %v180
    %v503 = vpack.c.b16 %v307, %v303
    %v504 = vpack.c.b16 %v308, %v304
    %v505 = vpack.c.b16 %v309, %v305
    %v506 = vpack.c.b16 %v310, %v306
    %v507 = vpack.c.b16 %v315, %v311
    %v508 = vpack.c.b16 %v316, %v312
    %v509 = vpack.c.b16 %v317, %v313
    %v510 = vpack.c.b16 %v318, %v314
    %v511 = vpack.c.b16 %v323, %v319
    %v512 = vpack.c.b16 %v324, %v320
    %v513 = vpack.c.b16 %v325, %v321
    %v514 = vpack.c.b16 %v326, %v322
    %v515 = vpack.c.b16 %v331, %v327
    %v516 = vpack.c.b16 %v332, %v328
    %v517 = vpack.c.b16 %v333, %v329
    %v518 = vpack.c.b16 %v334, %v330
    %v519 = vpack.c.b16 %v339, %v335
    %v520 = vpack.c.b16 %v340, %v336
    %v521 = vpack.c.b16 %v341, %v337
    %v522 = vpack.c.b16 %v342, %v338
    %v523 = vpack.c.b16 %v347, %v343
    %v524 = vpack.c.b16 %v348, %v344
    %v525 = vpack.c.b16 %v349, %v345
    %v526 = vpack.c.b16 %v350, %v346
    %v527 = vpack.c.b16 %v355, %v351
    %v528 = vpack.c.b16 %v356, %v352
    %v529 = vpack.c.b16 %v357, %v353
    %v530 = vpack.c.b16 %v358, %v354
    %v531 = vpack.c.b16 %v363, %v359
    %v532 = vpack.c.b16 %v364, %v360
    %v533 = vpack.c.b16 %v365, %v361
    %v534 = vpack.c.b16 %v366, %v362
    %v535 = vpack.c.b16 %v371, %v367
    %v536 = vpack.c.b16 %v372, %v368
    %v537 = vpack.c.b16 %v373, %v369
    %v538 = vpack.c.b16 %v374, %v370
    %v539 = vpack.c.b16 %v379, %v375
    %v540 = vpack.c.b16 %v380, %v376
    %v541 = vpack.c.b16 %v381, %v377
    %v542 = vpack.c.b16 %v382, %v378
    %v543 = vpack.c.b16 %v387, %v383
    %v544 = vpack.c.b16 %v388, %v384
    %v545 = vpack.c.b16 %v389, %v385
    %v546 = vpack.c.b16 %v390, %v386
    %v547 = vpack.c.b16 %v395, %v391
    %v548 = vpack.c.b16 %v396, %v392
    %v549 = vpack.c.b16 %v397, %v393
    %v550 = vpack.c.b16 %v398, %v394
    %v551 = vpack.c.b16 %v403, %v399
    %v552 = vpack.c.b16 %v404, %v400
    %v553 = vpack.c.b16 %v405, %v401
    %v554 = vpack.c.b16 %v406, %v402
    %v555 = vpack.c.b16 %v411, %v407
    %v556 = vpack.c.b16 %v412, %v408
    %v557 = vpack.c.b16 %v413, %v409
    %v558 = vpack.c.b16 %v414, %v410
    %v559 = vpack.c.b16 %v419, %v415
    %v560 = vpack.c.b16 %v420, %v416
    %v561 = vpack.c.b16 %v421, %v417
    %v562 = vpack.c.b16 %v422, %v418
    %v563 = vpack.c.b16 %v427, %v423
    %v564 = vpack.c.b16 %v428, %v424
    %v565 = vpack.c.b16 %v429, %v425
    %v566 = vpack.c.b16 %v430, %v426
    %v567 = vpack.c.b16 %v435, %v431
    %v568 = vpack.c.b16 %v436, %v432
    %v569 = vpack.c.b16 %v437, %v433
    %v570 = vpack.c.b16 %v438, %v434
    %v571 = vpack.c.b16 %v443, %v439
    %v572 = vpack.c.b16 %v444, %v440
    %v573 = vpack.c.b16 %v445, %v441
    %v574 = vpack.c.b16 %v446, %v442
    %v575 = vpack.c.b16 %v451, %v447
    %v576 = vpack.c.b16 %v452, %v448
    %v577 = vpack.c.b16 %v453, %v449
    %v578 = vpack.c.b16 %v454, %v450
    %v579 = vpack.c.b16 %v459, %v455
    %v580 = vpack.c.b16 %v460, %v456
    %v581 = vpack.c.b16 %v461, %v457
    %v582 = vpack.c.b16 %v462, %v458
    %v583 = vpack.c.b16 %v467, %v463
    %v584 = vpack.c.b16 %v468, %v464
    %v585 = vpack.c.b16 %v469, %v465
    %v586 = vpack.c.b16 %v470, %v466
    %v587 = vpack.c.b16 %v475, %v471
    %v588 = vpack.c.b16 %v476, %v472
    %v589 = vpack.c.b16 %v477, %v473
    %v590 = vpack.c.b16 %v478, %v474
    %v591 = vpack.c.b16 %v483, %v479
    %v592 = vpack.c.b16 %v484, %v480
    %v593 = vpack.c.b16 %v485, %v481
    %v594 = vpack.c.b16 %v486, %v482
    %v595 = vpack.c.b16 %v491, %v487
    %v596 = vpack.c.b16 %v492, %v488
    %v597 = vpack.c.b16 %v493, %v489
    %v598 = vpack.c.b16 %v494, %v490
    %v599 = vpack.c.b16 %v499, %v495
    %v600 = vpack.c.b16 %v500, %v496
    %v601 = vpack.c.b16 %v501, %v497
    %v602 = vpack.c.b16 %v502, %v498
    %vm703 = vcmask 130048
    %v705 = vsel %vm703, %v80, 0
    %707 = vmatprep.subr.bf16.mxu0 %v532
    %708 = vmatpush1.bf16.msra.mxu0 %v531
    %709 = vmatprep.subr.bf16.mxu0 %v528
    %710 = vmatpush1.bf16.msra.mxu0 %v527
    %711 = vmatprep.subr.bf16.mxu0 %v524
    %712 = vmatpush1.bf16.msra.mxu0 %v523
    %713 = vmatprep.subr.bf16.mxu0 %v520
    %714 = vmatpush1.bf16.msra.mxu0 %v519
    %715 = vmatprep.subr.bf16.mxu0 %v516
    %716 = vmatpush1.bf16.msra.mxu0 %v515
    %717 = vmatprep.subr.bf16.mxu0 %v512
    %718 = vmatpush1.bf16.msra.mxu0 %v511
    %719 = vmatprep.subr.bf16.mxu0 %v508
    %720 = vmatpush1.bf16.msra.mxu0 %v507
    %721 = vmatprep.subr.bf16.mxu0 %v504
    %722 = vmatpush1.bf16.msra.mxu0 %v503
    %723 = vmatprep.subr.bf16.mxu0 %v564
    %724 = vmatpush2.bf16.msra.mxu0 %v563
    %725 = vmatprep.subr.bf16.mxu0 %v560
    %726 = vmatpush2.bf16.msra.mxu0 %v559
    %727 = vmatprep.subr.bf16.mxu0 %v556
    %728 = vmatpush2.bf16.msra.mxu0 %v555
    %729 = vmatprep.subr.bf16.mxu0 %v552
    %730 = vmatpush2.bf16.msra.mxu0 %v551
    %731 = vmatprep.subr.bf16.mxu0 %v548
    %732 = vmatpush2.bf16.msra.mxu0 %v547
    %733 = vmatprep.subr.bf16.mxu0 %v544
    %734 = vmatpush2.bf16.msra.mxu0 %v543
    %735 = vmatprep.subr.bf16.mxu0 %v540
    %736 = vmatpush2.bf16.msra.mxu0 %v539
    %737 = vmatprep.subr.bf16.mxu0 %v536
    %738 = vmatpush2.bf16.msra.mxu0 %v535
    %739 = vmatprep.mubr.bf16.mxu0 %v78
    %740 = vmatmul.mubr.bf16.gmra.mxu0 %v77
    %v741 = vpop.f32.mrf.mxu0
    %v742 = vadd.f32 %v186, %v741
    %v743 = vpop.f32.mrf.mxu0
    %v744 = vadd.f32 %v190, %v743
    %v745 = vpop.f32.mrf.mxu0
    %v746 = vpop.f32.mrf.mxu0
    %747 = vdwg.mxu0
    %748 = vmatprep.subr.bf16.mxu0 %v596
    %749 = vmatpush1.bf16.msra.mxu0 %v595
    %750 = vmatprep.subr.bf16.mxu0 %v592
    %751 = vmatpush1.bf16.msra.mxu0 %v591
    %752 = vmatprep.subr.bf16.mxu0 %v588
    %753 = vmatpush1.bf16.msra.mxu0 %v587
    %754 = vmatprep.subr.bf16.mxu0 %v584
    %755 = vmatpush1.bf16.msra.mxu0 %v583
    %756 = vmatprep.subr.bf16.mxu0 %v580
    %757 = vmatpush1.bf16.msra.mxu0 %v579
    %758 = vmatprep.subr.bf16.mxu0 %v576
    %759 = vmatpush1.bf16.msra.mxu0 %v575
    %760 = vmatprep.subr.bf16.mxu0 %v572
    %761 = vmatpush1.bf16.msra.mxu0 %v571
    %762 = vmatprep.subr.bf16.mxu0 %v568
    %763 = vmatpush1.bf16.msra.mxu0 %v567
    %764 = vmatprep.subr.bf16.mxu0 0
    %765 = vmatpush2.bf16.msra.mxu0 0
    %766 = vmatprep.subr.bf16.mxu0 0
    %767 = vmatpush2.bf16.msra.mxu0 0
    %768 = vmatprep.subr.bf16.mxu0 0
    %769 = vmatpush2.bf16.msra.mxu0 0
    %770 = vmatprep.subr.bf16.mxu0 0
    %771 = vmatpush2.bf16.msra.mxu0 0
    %772 = vmatprep.subr.bf16.mxu0 0
    %773 = vmatpush2.bf16.msra.mxu0 0
    %774 = vmatprep.subr.bf16.mxu0 0
    %775 = vmatpush2.bf16.msra.mxu0 0
    %776 = vmatprep.subr.bf16.mxu0 0
    %777 = vmatpush2.bf16.msra.mxu0 0
    %778 = vmatprep.subr.bf16.mxu0 %v600
    %779 = vmatpush2.bf16.msra.mxu0 %v599
    %780 = vmatprep.mubr.bf16.mxu0 %v705
    %781 = vmatmul.mubr.bf16.gmra.mxu0 %v79
    %v782 = vpop.f32.mrf.mxu0
    %v783 = vadd.f32 %v742, %v782
    %v784 = vpop.f32.mrf.mxu0
    %v785 = vadd.f32 %v744, %v784
    %v786 = vpop.f32.mrf.mxu0
    %v787 = vpop.f32.mrf.mxu0
    %788 = vdwg.mxu0
    %789 = vmatprep.subr.bf16.mxu0 %v534
    %790 = vmatpush1.bf16.msra.mxu0 %v533
    %791 = vmatprep.subr.bf16.mxu0 %v530
    %792 = vmatpush1.bf16.msra.mxu0 %v529
    %793 = vmatprep.subr.bf16.mxu0 %v526
    %794 = vmatpush1.bf16.msra.mxu0 %v525
    %795 = vmatprep.subr.bf16.mxu0 %v522
    %796 = vmatpush1.bf16.msra.mxu0 %v521
    %797 = vmatprep.subr.bf16.mxu0 %v518
    %798 = vmatpush1.bf16.msra.mxu0 %v517
    %799 = vmatprep.subr.bf16.mxu0 %v514
    %800 = vmatpush1.bf16.msra.mxu0 %v513
    %801 = vmatprep.subr.bf16.mxu0 %v510
    %802 = vmatpush1.bf16.msra.mxu0 %v509
    %803 = vmatprep.subr.bf16.mxu0 %v506
    %804 = vmatpush1.bf16.msra.mxu0 %v505
    %805 = vmatprep.subr.bf16.mxu0 %v566
    %806 = vmatpush2.bf16.msra.mxu0 %v565
    %807 = vmatprep.subr.bf16.mxu0 %v562
    %808 = vmatpush2.bf16.msra.mxu0 %v561
    %809 = vmatprep.subr.bf16.mxu0 %v558
    %810 = vmatpush2.bf16.msra.mxu0 %v557
    %811 = vmatprep.subr.bf16.mxu0 %v554
    %812 = vmatpush2.bf16.msra.mxu0 %v553
    %813 = vmatprep.subr.bf16.mxu0 %v550
    %814 = vmatpush2.bf16.msra.mxu0 %v549
    %815 = vmatprep.subr.bf16.mxu0 %v546
    %816 = vmatpush2.bf16.msra.mxu0 %v545
    %817 = vmatprep.subr.bf16.mxu0 %v542
    %818 = vmatpush2.bf16.msra.mxu0 %v541
    %819 = vmatprep.subr.bf16.mxu0 %v538
    %820 = vmatpush2.bf16.msra.mxu0 %v537
    %821 = vmatprep.mubr.bf16.mxu0 %v78
    %822 = vmatmul.mubr.bf16.gmra.mxu0 %v77
    %v823 = vpop.f32.mrf.mxu0
    %v824 = vadd.f32 %v194, %v823
    %v825 = vpop.f32.mrf.mxu0
    %v826 = vadd.f32 %v198, %v825
    %v827 = vpop.f32.mrf.mxu0
    %v828 = vpop.f32.mrf.mxu0
    %829 = vdwg.mxu0
    %830 = vmatprep.subr.bf16.mxu0 %v598
    %831 = vmatpush1.bf16.msra.mxu0 %v597
    %832 = vmatprep.subr.bf16.mxu0 %v594
    %833 = vmatpush1.bf16.msra.mxu0 %v593
    %834 = vmatprep.subr.bf16.mxu0 %v590
    %835 = vmatpush1.bf16.msra.mxu0 %v589
    %836 = vmatprep.subr.bf16.mxu0 %v586
    %837 = vmatpush1.bf16.msra.mxu0 %v585
    %838 = vmatprep.subr.bf16.mxu0 %v582
    %839 = vmatpush1.bf16.msra.mxu0 %v581
    %840 = vmatprep.subr.bf16.mxu0 %v578
    %841 = vmatpush1.bf16.msra.mxu0 %v577
    %842 = vmatprep.subr.bf16.mxu0 %v574
    %843 = vmatpush1.bf16.msra.mxu0 %v573
    %844 = vmatprep.subr.bf16.mxu0 %v570
    %845 = vmatpush1.bf16.msra.mxu0 %v569
    %846 = vmatprep.subr.bf16.mxu0 0
    %847 = vmatpush2.bf16.msra.mxu0 0
    %848 = vmatprep.subr.bf16.mxu0 0
    %849 = vmatpush2.bf16.msra.mxu0 0
    %850 = vmatprep.subr.bf16.mxu0 0
    %851 = vmatpush2.bf16.msra.mxu0 0
    %852 = vmatprep.subr.bf16.mxu0 0
    %853 = vmatpush2.bf16.msra.mxu0 0
    %854 = vmatprep.subr.bf16.mxu0 0
    %855 = vmatpush2.bf16.msra.mxu0 0
    %856 = vmatprep.subr.bf16.mxu0 0
    %857 = vmatpush2.bf16.msra.mxu0 0
    %858 = vmatprep.subr.bf16.mxu0 0
    %859 = vmatpush2.bf16.msra.mxu0 0
    %860 = vmatprep.subr.bf16.mxu0 %v602
    %861 = vmatpush2.bf16.msra.mxu0 %v601
    %862 = vmatprep.mubr.bf16.mxu0 %v705
    %863 = vmatmul.mubr.bf16.gmra.mxu0 %v79
    %v864 = vpop.f32.mrf.mxu0
    %v865 = vadd.f32 %v824, %v864
    %v866 = vpop.f32.mrf.mxu0
    %v867 = vadd.f32 %v826, %v866
    %v868 = vpop.f32.mrf.mxu0
    %v869 = vpop.f32.mrf.mxu0
    %870 = vdwg.mxu0
    %v871 = vmax.f32 %v783, 0.0
    %v872 = vmax.f32 %v785, 0.0
    %v873 = vmax.f32 %v865, 0.0
    %v874 = vmax.f32 %v867, 0.0
    %v875 = vpack.c.bf16 %v871, %v871
    %v876 = vpack.c.bf16 %v872, %v872
    %v877 = vpack.c.bf16 %v873, %v873
    %v878 = vpack.c.bf16 %v874, %v874
    %v879 = vld [vmem:[#allocation8] sm:$0xf]
    %v880 = vld [vmem:[#allocation8 + $0x4] sm:$0xf]
    %v881 = vld [vmem:[#allocation8 + $0x8] sm:$0xf]
    %v882 = vld [vmem:[#allocation8 + $0xc] sm:$0xf]
    %v883 = vld [vmem:[#allocation8 + $0x10] sm:$0xf]
    %v884 = vld [vmem:[#allocation8 + $0x14] sm:$0xf]
    %v885 = vld [vmem:[#allocation8 + $0x18] sm:$0xf]
    %v886 = vld [vmem:[#allocation8 + $0x1c] sm:$0xf]
    %v887 = vld [vmem:[#allocation8 + $0x20] sm:$0xf]
    %v888 = vld [vmem:[#allocation8 + $0x24] sm:$0xf]
    %v889 = vld [vmem:[#allocation8 + $0x28] sm:$0xf]
    %v890 = vld [vmem:[#allocation8 + $0x2c] sm:$0xf]
    %v891 = vld [vmem:[#allocation8 + $0x30] sm:$0xf]
    %v892 = vld [vmem:[#allocation8 + $0x34] sm:$0xf]
    %v893 = vld [vmem:[#allocation8 + $0x38] sm:$0xf]
    %v894 = vld [vmem:[#allocation8 + $0x3c] sm:$0xf]
    %v895 = vld [vmem:[#allocation8 + $0x40] sm:$0xf]
    %v896 = vld [vmem:[#allocation8 + $0x44] sm:$0xf]
    %v897 = vld [vmem:[#allocation8 + $0x48] sm:$0xf]
    %v898 = vld [vmem:[#allocation8 + $0x4c] sm:$0xf]
    %v899 = vld [vmem:[#allocation8 + $0x50] sm:$0xf]
    %v900 = vld [vmem:[#allocation8 + $0x54] sm:$0xf]
    %v901 = vld [vmem:[#allocation8 + $0x58] sm:$0xf]
    %v902 = vld [vmem:[#allocation8 + $0x5c] sm:$0xf]
    %v903 = vld [vmem:[#allocation8 + $0x60] sm:$0xf]
    %v904 = vld [vmem:[#allocation8 + $0x64] sm:$0xf]
    %v905 = vld [vmem:[#allocation8 + $0x68] sm:$0xf]
    %v906 = vld [vmem:[#allocation8 + $0x6c] sm:$0xf]
    %v907 = vld [vmem:[#allocation8 + $0x70] sm:$0xf]
    %v908 = vld [vmem:[#allocation8 + $0x74] sm:$0xf]
    %v909 = vld [vmem:[#allocation8 + $0x78] sm:$0xf]
    %v910 = vld [vmem:[#allocation8 + $0x7c] sm:$0xf]
    %v911 = vld [vmem:[#allocation8 + $0x80] sm:$0xf]
    %v912 = vld [vmem:[#allocation8 + $0x84] sm:$0xf]
    %v913 = vld [vmem:[#allocation8 + $0x88] sm:$0xf]
    %v914 = vld [vmem:[#allocation8 + $0x8c] sm:$0xf]
    %v915 = vld [vmem:[#allocation8 + $0x90] sm:$0xf]
    %v916 = vld [vmem:[#allocation8 + $0x94] sm:$0xf]
    %v917 = vld [vmem:[#allocation8 + $0x98] sm:$0xf]
    %v918 = vld [vmem:[#allocation8 + $0x9c] sm:$0xf]
    %v919 = vld [vmem:[#allocation8 + $0xa0] sm:$0xf]
    %v920 = vld [vmem:[#allocation8 + $0xa4] sm:$0xf]
    %v921 = vld [vmem:[#allocation8 + $0xa8] sm:$0xf]
    %v922 = vld [vmem:[#allocation8 + $0xac] sm:$0xf]
    %v923 = vld [vmem:[#allocation8 + $0xb0] sm:$0xf]
    %v924 = vld [vmem:[#allocation8 + $0xb4] sm:$0xf]
    %v925 = vld [vmem:[#allocation8 + $0xb8] sm:$0xf]
    %v926 = vld [vmem:[#allocation8 + $0xbc] sm:$0xf]
    %v927 = vld [vmem:[#allocation8 + $0xc0] sm:$0xf]
    %v928 = vld [vmem:[#allocation8 + $0xc4] sm:$0xf]
    %v929 = vld [vmem:[#allocation8 + $0xc8] sm:$0xf]
    %v930 = vld [vmem:[#allocation8 + $0xcc] sm:$0xf]
    %v931 = vld [vmem:[#allocation8 + $0xd0] sm:$0xf]
    %v932 = vld [vmem:[#allocation8 + $0xd4] sm:$0xf]
    %v933 = vld [vmem:[#allocation8 + $0xd8] sm:$0xf]
    %v934 = vld [vmem:[#allocation8 + $0xdc] sm:$0xf]
    %v935 = vld [vmem:[#allocation8 + $0xe0] sm:$0xf]
    %v936 = vld [vmem:[#allocation8 + $0xe4] sm:$0xf]
    %v937 = vld [vmem:[#allocation8 + $0xe8] sm:$0xf]
    %v938 = vld [vmem:[#allocation8 + $0xec] sm:$0xf]
    %v939 = vld [vmem:[#allocation8 + $0xf0] sm:$0xf]
    %v940 = vld [vmem:[#allocation8 + $0xf4] sm:$0xf]
    %v941 = vld [vmem:[#allocation8 + $0xf8] sm:$0xf]
    %v942 = vld [vmem:[#allocation8 + $0xfc] sm:$0xf]
    %v943 = vld [vmem:[%s4] sm:$0x1]
    %v945 = vlaneseq
    %v946 = vshrl.u32 %v945, 7
    %v947 = vsub.s32 0, %v946
    %v948 = vrot.slane %v943, %v947
    %v1014 = vunpack.c.l.b16 %v879
    %v1015 = vunpack.c.l.b16 %v880
    %v1016 = vunpack.c.l.b16 %v881
    %v1017 = vunpack.c.l.b16 %v882
    %v1018 = vunpack.c.l.b16 %v883
    %v1019 = vunpack.c.l.b16 %v884
    %v1020 = vunpack.c.l.b16 %v885
    %v1021 = vunpack.c.l.b16 %v886
    %v1022 = vunpack.c.l.b16 %v887
    %v1023 = vunpack.c.l.b16 %v888
    %v1024 = vunpack.c.l.b16 %v889
    %v1025 = vunpack.c.l.b16 %v890
    %v1026 = vunpack.c.l.b16 %v891
    %v1027 = vunpack.c.l.b16 %v892
    %v1028 = vunpack.c.l.b16 %v893
    %v1029 = vunpack.c.l.b16 %v894
    %v1030 = vunpack.c.l.b16 %v895
    %v1031 = vunpack.c.l.b16 %v896
    %v1032 = vunpack.c.l.b16 %v897
    %v1033 = vunpack.c.l.b16 %v898
    %v1034 = vunpack.c.l.b16 %v899
    %v1035 = vunpack.c.l.b16 %v900
    %v1036 = vunpack.c.l.b16 %v901
    %v1037 = vunpack.c.l.b16 %v902
    %v1038 = vunpack.c.l.b16 %v903
    %v1039 = vunpack.c.l.b16 %v904
    %v1040 = vunpack.c.l.b16 %v905
    %v1041 = vunpack.c.l.b16 %v906
    %v1042 = vunpack.c.l.b16 %v907
    %v1043 = vunpack.c.l.b16 %v908
    %v1044 = vunpack.c.l.b16 %v909
    %v1045 = vunpack.c.l.b16 %v910
    %v1046 = vunpack.c.l.b16 %v911
    %v1047 = vunpack.c.l.b16 %v912
    %v1048 = vunpack.c.l.b16 %v913
    %v1049 = vunpack.c.l.b16 %v914
    %v1050 = vunpack.c.l.b16 %v915
    %v1051 = vunpack.c.l.b16 %v916
    %v1052 = vunpack.c.l.b16 %v917
    %v1053 = vunpack.c.l.b16 %v918
    %v1054 = vunpack.c.l.b16 %v919
    %v1055 = vunpack.c.l.b16 %v920
    %v1056 = vunpack.c.l.b16 %v921
    %v1057 = vunpack.c.l.b16 %v922
    %v1058 = vunpack.c.l.b16 %v923
    %v1059 = vunpack.c.l.b16 %v924
    %v1060 = vunpack.c.l.b16 %v925
    %v1061 = vunpack.c.l.b16 %v926
    %v1062 = vunpack.c.l.b16 %v927
    %v1063 = vunpack.c.l.b16 %v928
    %v1064 = vunpack.c.l.b16 %v929
    %v1065 = vunpack.c.l.b16 %v930
    %v1066 = vunpack.c.l.b16 %v931
    %v1067 = vunpack.c.l.b16 %v932
    %v1068 = vunpack.c.l.b16 %v933
    %v1069 = vunpack.c.l.b16 %v934
    %v1070 = vunpack.c.l.b16 %v935
    %v1071 = vunpack.c.l.b16 %v936
    %v1072 = vunpack.c.l.b16 %v937
    %v1073 = vunpack.c.l.b16 %v938
    %v1074 = vunpack.c.l.b16 %v939
    %v1075 = vunpack.c.l.b16 %v940
    %v1076 = vunpack.c.l.b16 %v941
    %v1077 = vunpack.c.l.b16 %v942
    %v1078 = vpack.c.b16 %v1015, %v1014
    %v1079 = vpack.c.b16 %v1017, %v1016
    %v1080 = vpack.c.b16 %v1019, %v1018
    %v1081 = vpack.c.b16 %v1021, %v1020
    %v1082 = vpack.c.b16 %v1023, %v1022
    %v1083 = vpack.c.b16 %v1025, %v1024
    %v1084 = vpack.c.b16 %v1027, %v1026
    %v1085 = vpack.c.b16 %v1029, %v1028
    %v1086 = vpack.c.b16 %v1031, %v1030
    %v1087 = vpack.c.b16 %v1033, %v1032
    %v1088 = vpack.c.b16 %v1035, %v1034
    %v1089 = vpack.c.b16 %v1037, %v1036
    %v1090 = vpack.c.b16 %v1039, %v1038
    %v1091 = vpack.c.b16 %v1041, %v1040
    %v1092 = vpack.c.b16 %v1043, %v1042
    %v1093 = vpack.c.b16 %v1045, %v1044
    %v1094 = vpack.c.b16 %v1047, %v1046
    %v1095 = vpack.c.b16 %v1049, %v1048
    %v1096 = vpack.c.b16 %v1051, %v1050
    %v1097 = vpack.c.b16 %v1053, %v1052
    %v1098 = vpack.c.b16 %v1055, %v1054
    %v1099 = vpack.c.b16 %v1057, %v1056
    %v1100 = vpack.c.b16 %v1059, %v1058
    %v1101 = vpack.c.b16 %v1061, %v1060
    %v1102 = vpack.c.b16 %v1063, %v1062
    %v1103 = vpack.c.b16 %v1065, %v1064
    %v1104 = vpack.c.b16 %v1067, %v1066
    %v1105 = vpack.c.b16 %v1069, %v1068
    %v1106 = vpack.c.b16 %v1071, %v1070
    %v1107 = vpack.c.b16 %v1073, %v1072
    %v1108 = vpack.c.b16 %v1075, %v1074
    %v1109 = vpack.c.b16 %v1077, %v1076
    %1142 = vmatprep.subr.bf16.mxu0 0
    %1143 = vmatpush1.bf16.msra.mxu0 %v1085
    %1144 = vmatprep.subr.bf16.mxu0 0
    %1145 = vmatpush1.bf16.msra.mxu0 %v1084
    %1146 = vmatprep.subr.bf16.mxu0 0
    %1147 = vmatpush1.bf16.msra.mxu0 %v1083
    %1148 = vmatprep.subr.bf16.mxu0 0
    %1149 = vmatpush1.bf16.msra.mxu0 %v1082
    %1150 = vmatprep.subr.bf16.mxu0 0
    %1151 = vmatpush1.bf16.msra.mxu0 %v1081
    %1152 = vmatprep.subr.bf16.mxu0 0
    %1153 = vmatpush1.bf16.msra.mxu0 %v1080
    %1154 = vmatprep.subr.bf16.mxu0 0
    %1155 = vmatpush1.bf16.msra.mxu0 %v1079
    %1156 = vmatprep.subr.bf16.mxu0 0
    %1157 = vmatpush1.bf16.msra.mxu0 %v1078
    %1158 = vmatprep.subr.bf16.mxu0 0
    %1159 = vmatpush2.bf16.msra.mxu0 %v1093
    %1160 = vmatprep.subr.bf16.mxu0 0
    %1161 = vmatpush2.bf16.msra.mxu0 %v1092
    %1162 = vmatprep.subr.bf16.mxu0 0
    %1163 = vmatpush2.bf16.msra.mxu0 %v1091
    %1164 = vmatprep.subr.bf16.mxu0 0
    %1165 = vmatpush2.bf16.msra.mxu0 %v1090
    %1166 = vmatprep.subr.bf16.mxu0 0
    %1167 = vmatpush2.bf16.msra.mxu0 %v1089
    %1168 = vmatprep.subr.bf16.mxu0 0
    %1169 = vmatpush2.bf16.msra.mxu0 %v1088
    %1170 = vmatprep.subr.bf16.mxu0 0
    %1171 = vmatpush2.bf16.msra.mxu0 %v1087
    %1172 = vmatprep.subr.bf16.mxu0 0
    %1173 = vmatpush2.bf16.msra.mxu0 %v1086
    %1174 = vmatprep.mubr.bf16.mxu0 %v876
    %1175 = vmatmul.mubr.bf16.gmra.mxu0 %v875
    %v1176 = vpop.f32.mrf.mxu0
    %v1177 = vadd.f32 %v948, %v1176
    %v1178 = vpop.f32.mrf.mxu0
    %v1179 = vpop.f32.mrf.mxu0
    %v1180 = vpop.f32.mrf.mxu0
    %1181 = vdwg.mxu0
    %1182 = vmatprep.subr.bf16.mxu0 0
    %1183 = vmatpush1.bf16.msra.mxu0 %v1101
    %1184 = vmatprep.subr.bf16.mxu0 0
    %1185 = vmatpush1.bf16.msra.mxu0 %v1100
    %1186 = vmatprep.subr.bf16.mxu0 0
    %1187 = vmatpush1.bf16.msra.mxu0 %v1099
    %1188 = vmatprep.subr.bf16.mxu0 0
    %1189 = vmatpush1.bf16.msra.mxu0 %v1098
    %1190 = vmatprep.subr.bf16.mxu0 0
    %1191 = vmatpush1.bf16.msra.mxu0 %v1097
    %1192 = vmatprep.subr.bf16.mxu0 0
    %1193 = vmatpush1.bf16.msra.mxu0 %v1096
    %1194 = vmatprep.subr.bf16.mxu0 0
    %1195 = vmatpush1.bf16.msra.mxu0 %v1095
    %1196 = vmatprep.subr.bf16.mxu0 0
    %1197 = vmatpush1.bf16.msra.mxu0 %v1094
    %1198 = vmatprep.subr.bf16.mxu0 0
    %1199 = vmatpush2.bf16.msra.mxu0 %v1109
    %1200 = vmatprep.subr.bf16.mxu0 0
    %1201 = vmatpush2.bf16.msra.mxu0 %v1108
    %1202 = vmatprep.subr.bf16.mxu0 0
    %1203 = vmatpush2.bf16.msra.mxu0 %v1107
    %1204 = vmatprep.subr.bf16.mxu0 0
    %1205 = vmatpush2.bf16.msra.mxu0 %v1106
    %1206 = vmatprep.subr.bf16.mxu0 0
    %1207 = vmatpush2.bf16.msra.mxu0 %v1105
    %1208 = vmatprep.subr.bf16.mxu0 0
    %1209 = vmatpush2.bf16.msra.mxu0 %v1104
    %1210 = vmatprep.subr.bf16.mxu0 0
    %1211 = vmatpush2.bf16.msra.mxu0 %v1103
    %1212 = vmatprep.subr.bf16.mxu0 0
    %1213 = vmatpush2.bf16.msra.mxu0 %v1102
    %1214 = vmatprep.mubr.bf16.mxu0 %v878
    %1215 = vmatmul.mubr.bf16.gmra.mxu0 %v877
    %v1216 = vpop.f32.mrf.mxu0
    %v1217 = vadd.f32 %v1177, %v1216
    %v1218 = vpop.f32.mrf.mxu0
    %v1219 = vpop.f32.mrf.mxu0
    %v1220 = vpop.f32.mrf.mxu0
    %1221 = vdwg.mxu0
    %vm1222 = vcmask 408576
    %1223 = vst.msk [vmem:[#allocation10] sm:$0xff] %vm1222, %v1217
    // Predicated region
    $region38: #{tpu_custom_call.1} parent=1 // pred_check
      _
    $region39: #{tpu_custom_call.1} parent=1 // pred_check_branch
      %1225 = sbr.rel (0) target = $region41
    $region40: #{tpu_custom_call.1} parent=1 // pred_region
      %s1227 = ssub.s32 128, 128
      %1228 = vsyncadd [#allocation4], %s1227
      %s1230 = sshll.u32 [#allocation10], 4
      %s1231 = int_to_ptr.vmem [resolvable:$true] %s1230
      %1233 = dma.vmem_to_hbm [thread:$0]  %s1231, 128, %s5, [#allocation4]
    $region41: #{tpu_custom_call.1} parent=1 // pred_fallthru
      _
    // Predicated region
    $region42: #{tpu_custom_call.1} parent=1 // pred_check
      _
    $region43: #{tpu_custom_call.1} parent=1 // pred_check_branch
      %1235 = sbr.rel (0) target = $region45
    $region44: #{tpu_custom_call.1} parent=1 // pred_region
      %1236 = dma.done [#allocation4], 128
    $region45: #{tpu_custom_call.1} parent=1 // pred_fallthru
      _
    %1237 = vsyncpa [#allocation3], 1
    %1238 = vsyncpa [#allocation6], 1
    %1239 = vsyncpa [#allocation9], 1
    %1240 = vsyncpa [#allocation4], 1

</llo_original>
